<compile_context>
chip_gen: v7x
topology: tpu7x:2x2x1
jax: 0.10.0
libtpu: 0.0.40
codegen_flags: <defaults>
</compile_context>

<pallas_src>
import jax
import jax.numpy as jnp
from jax.experimental import pallas as pl
from jax.experimental.pallas import tpu as pltpu


def _round_up(x, m):
    return ((x + m - 1) // m) * m


def _se_kernel(x_ref, w1_ref, b1_ref, w2_ref, b2_ref, o_ref):
    # x_ref:  (C_in,  T)   tile of one image's pixels, channels on sublanes
    # w1_ref: (C_sq, C_in)
    # b1_ref: (C_sq, 1)
    # w2_ref: (C_out, C_sq)
    # b2_ref: (C_out, 1)
    # o_ref:  (C_out, T)
    x = x_ref[...]
    C_in, T = x.shape
    C_sq = w1_ref.shape[0]
    C_out = w2_ref.shape[0]

    # Keep elementwise math in f32 (safe on v5e which has no bf16 VPU/EUP;
    # kernel is HBM-bound so this is hidden on v6e/v7x for f32 inputs).
    xf = x.astype(jnp.float32)
    w1 = w1_ref[...].astype(jnp.float32)
    b1 = b1_ref[...].astype(jnp.float32)
    w2 = w2_ref[...].astype(jnp.float32)
    b2 = b2_ref[...].astype(jnp.float32)

    small_channels = (C_in <= 32) and (C_sq <= 32)

    if small_channels:
        # VPU path: unrolled rank-1 updates (outer products), MXU would be
        # <4% utilized for K this small and the VALU slots are otherwise idle.
        h = w1[:, 0:1] * xf[0:1, :]
        for c in range(1, C_in):
            h = h + w1[:, c:c + 1] * xf[c:c + 1, :]
        h = h + b1                                   # (C_sq, T)
        h = h * jax.nn.sigmoid(h)                    # SiLU / Swish

        s = w2[:, 0:1] * h[0:1, :]
        for j in range(1, C_sq):
            s = s + w2[:, j:j + 1] * h[j:j + 1, :]
        s = s + b2                                   # (C_out, T)
    else:
        # MXU path for production-sized channel counts.
        h = jnp.dot(w1, xf, preferred_element_type=jnp.float32) + b1
        h = h * jax.nn.sigmoid(h)
        s = jnp.dot(w2, h, preferred_element_type=jnp.float32) + b2

    s = jax.nn.sigmoid(s)                            # gate
    o_ref[...] = (s * xf).astype(o_ref.dtype)        # FloatFunctional.mul


def se_block(inputs_nchw, w1, b1, w2, b2, *, lane_tile=1024):
    """inputs_nchw: (N, C_in, H, W); w1: (C_sq, C_in, 1, 1); w2: (C_out, C_sq, 1, 1)."""
    N, C_in, H, W = inputs_nchw.shape
    C_sq = w1.shape[0]
    C_out = w2.shape[0]
    assert C_out == C_in, "elementwise mul with inputs requires out_channels == in_channels"

    HW = H * W
    x3d = inputs_nchw.reshape(N, C_in, HW)           # free reshape, stays NCHW

    # Lane tile: as large as reasonable, multiple of 128, lane-dense output.
    T = min(_round_up(lane_tile, 128), _round_up(HW, 128))
    HW_pad = _round_up(HW, T)
    if HW_pad != HW:
        # Padded columns see x=0 -> out = sigmoid(...)*0 = 0, sliced off below.
        x3d = jnp.pad(x3d, ((0, 0), (0, 0), (0, HW_pad - HW)))

    # 1x1 conv weights as (out, in) matrices; biases as (out, 1) columns.
    w1_m = w1.reshape(C_sq, C_in)
    w2_m = w2.reshape(C_out, C_sq)
    b1_c = b1.reshape(C_sq, 1)
    b2_c = b2.reshape(C_out, 1)

    itemsize = jnp.dtype(inputs_nchw.dtype).itemsize
    # Double-buffered input + output tiles plus (tiny) weights, with headroom;
    # capped under v7x's 64 MiB physical / 32 MiB scoped VMEM.
    vmem_need = 4 * (C_in + C_out) * T * itemsize \
        + 4 * 4 * (C_sq * C_in + C_out * C_sq + C_sq + C_out)
    vmem_limit = int(min(48 << 20, max(vmem_need + (4 << 20), 16 << 20)))

    elems = N * HW
    cost = pl.CostEstimate(
        flops=int(2 * elems * (C_in * C_sq + C_sq * C_out) + 4 * elems * C_out),
        transcendentals=int(elems * (C_sq + C_out)),
        bytes_accessed=int(elems * (C_in + C_out) * itemsize
                           + 4 * (C_sq * C_in + C_out * C_sq + C_sq + C_out)),
    )

    grid = (N, HW_pad // T)
    out3d = pl.pallas_call(
        _se_kernel,
        out_shape=jax.ShapeDtypeStruct((N, C_out, HW_pad), inputs_nchw.dtype),
        grid_spec=pltpu.PrefetchScalarGridSpec(
            num_scalar_prefetch=0,
            grid=grid,
            in_specs=[
                pl.BlockSpec((None, C_in, T), lambda n, t: (n, 0, t)),
                pl.BlockSpec((C_sq, C_in), lambda n, t: (0, 0)),
                pl.BlockSpec((C_sq, 1), lambda n, t: (0, 0)),
                pl.BlockSpec((C_out, C_sq), lambda n, t: (0, 0)),
                pl.BlockSpec((C_out, 1), lambda n, t: (0, 0)),
            ],
            out_specs=pl.BlockSpec((None, C_out, T), lambda n, t: (n, 0, t)),
        ),
        compiler_params=pltpu.CompilerParams(
            dimension_semantics=("parallel", "parallel"),
            vmem_limit_bytes=vmem_limit,
        ),
        cost_estimate=cost,
    )(x3d, w1_m, b1_c, w2_m, b2_c)

    out3d = out3d[:, :, :HW]
    return out3d.reshape(N, C_out, H, W)


def _reference(x_nchw, w1, b1, w2, b2):
    """Pure-JAX reference in NCHW, matching PyTorch."""
    w1m = w1.reshape(w1.shape[0], -1)
    w2m = w2.reshape(w2.shape[0], -1)
    h = jnp.einsum("oc,nchw->nohw", w1m, x_nchw) + b1[None, :, None, None]
    h = h * jax.nn.sigmoid(h)
    s = jnp.einsum("oc,nchw->nohw", w2m, h) + b2[None, :, None, None]
    s = jax.nn.sigmoid(s)
    return s * x_nchw


if __name__ == "__main__":
    # Small shapes consistent with the module: batch=2, in_channels=4,
    # num_squeezed_channels=2, out_channels=4, spatial 16x16.
    N, C_in, H, W = 2, 4, 16, 16
    C_sq, C_out = 2, 4

    key = jax.random.PRNGKey(0)
    k_x, k_w1, k_b1, k_w2, k_b2 = jax.random.split(key, 5)

    x = jax.random.normal(k_x, (N, C_in, H, W), dtype=jnp.float32)
    w1 = jax.random.normal(k_w1, (C_sq, C_in, 1, 1), dtype=jnp.float32) * 0.5
    b1 = jax.random.normal(k_b1, (C_sq,), dtype=jnp.float32) * 0.1
    w2 = jax.random.normal(k_w2, (C_out, C_sq, 1, 1), dtype=jnp.float32) * 0.5
    b2 = jax.random.normal(k_b2, (C_out,), dtype=jnp.float32) * 0.1

    out = se_block(x, w1, b1, w2, b2)
    jax.block_until_ready(out)

    ref = _reference(x, w1, b1, w2, b2)
    assert out.shape == x.shape
    assert jnp.allclose(out, ref, atol=1e-5, rtol=1e-5)
    print("KERNEL_OK")
</pallas_src>

<mosaic_0001>
module attributes {stable_mosaic.version = 11 : i64} {
  func.func @_se_kernel(%arg0: i32, %arg1: i32, %arg2: memref<1x4x256xf32, #tpu.memory_space<vmem>>, %arg3: memref<2x4xf32, #tpu.memory_space<vmem>>, %arg4: memref<2x1xf32, #tpu.memory_space<vmem>>, %arg5: memref<4x2xf32, #tpu.memory_space<vmem>>, %arg6: memref<4x1xf32, #tpu.memory_space<vmem>>, %arg7: memref<1x4x256xf32, #tpu.memory_space<vmem>>) attributes {dimension_semantics = [#tpu.dimension_semantics<parallel>, #tpu.dimension_semantics<parallel>], iteration_bounds = array<i64: 2, 1>, scalar_prefetch = 0 : i64, scratch_operands = 0 : i64, tpu.core_type = #tpu.core_type<tc>, window_params = [{transform_indices = @transform_0, window_bounds = array<i64: 1, 4, 256>}, {pipeline_mode = #tpu.pipeline_mode<synchronous>, transform_indices = @transform_1, window_bounds = array<i64: 2, 4>}, {pipeline_mode = #tpu.pipeline_mode<synchronous>, transform_indices = @transform_2, window_bounds = array<i64: 2, 1>}, {pipeline_mode = #tpu.pipeline_mode<synchronous>, transform_indices = @transform_3, window_bounds = array<i64: 4, 2>}, {pipeline_mode = #tpu.pipeline_mode<synchronous>, transform_indices = @transform_4, window_bounds = array<i64: 4, 1>}, {transform_indices = @transform_5, window_bounds = array<i64: 1, 4, 256>}]} {
    %c0 = arith.constant 0 : index
    %c0_0 = arith.constant 0 : index
    %c0_1 = arith.constant 0 : index
    %0 = vector.load %arg2[%c0, %c0_0, %c0_1] : memref<1x4x256xf32, #tpu.memory_space<vmem>>, vector<1x4x256xf32>
    %1 = vector.shape_cast %0 : vector<1x4x256xf32> to vector<4x256xf32>
    %c0_2 = arith.constant 0 : index
    %c0_3 = arith.constant 0 : index
    %2 = vector.load %arg3[%c0_2, %c0_3] : memref<2x4xf32, #tpu.memory_space<vmem>>, vector<2x4xf32>
    %c0_4 = arith.constant 0 : index
    %c0_5 = arith.constant 0 : index
    %3 = vector.load %arg4[%c0_4, %c0_5] : memref<2x1xf32, #tpu.memory_space<vmem>>, vector<2x1xf32>
    %c0_6 = arith.constant 0 : index
    %c0_7 = arith.constant 0 : index
    %4 = vector.load %arg5[%c0_6, %c0_7] : memref<4x2xf32, #tpu.memory_space<vmem>>, vector<4x2xf32>
    %c0_8 = arith.constant 0 : index
    %c0_9 = arith.constant 0 : index
    %5 = vector.load %arg6[%c0_8, %c0_9] : memref<4x1xf32, #tpu.memory_space<vmem>>, vector<4x1xf32>
    %6 = vector.extract_strided_slice %2 {offsets = [0, 0], sizes = [2, 1], strides = [1, 1]} : vector<2x4xf32> to vector<2x1xf32>
    %7 = vector.extract_strided_slice %1 {offsets = [0, 0], sizes = [1, 256], strides = [1, 1]} : vector<4x256xf32> to vector<1x256xf32>
    %8 = vector.broadcast %6 : vector<2x1xf32> to vector<2x256xf32>
    %9 = vector.broadcast %7 : vector<1x256xf32> to vector<2x256xf32>
    %10 = arith.mulf %8, %9 : vector<2x256xf32>
    %11 = vector.extract_strided_slice %2 {offsets = [0, 1], sizes = [2, 1], strides = [1, 1]} : vector<2x4xf32> to vector<2x1xf32>
    %12 = vector.extract_strided_slice %1 {offsets = [1, 0], sizes = [1, 256], strides = [1, 1]} : vector<4x256xf32> to vector<1x256xf32>
    %13 = vector.broadcast %11 : vector<2x1xf32> to vector<2x256xf32>
    %14 = vector.broadcast %12 : vector<1x256xf32> to vector<2x256xf32>
    %15 = arith.mulf %13, %14 : vector<2x256xf32>
    %16 = arith.addf %10, %15 : vector<2x256xf32>
    %17 = vector.extract_strided_slice %2 {offsets = [0, 2], sizes = [2, 1], strides = [1, 1]} : vector<2x4xf32> to vector<2x1xf32>
    %18 = vector.extract_strided_slice %1 {offsets = [2, 0], sizes = [1, 256], strides = [1, 1]} : vector<4x256xf32> to vector<1x256xf32>
    %19 = vector.broadcast %17 : vector<2x1xf32> to vector<2x256xf32>
    %20 = vector.broadcast %18 : vector<1x256xf32> to vector<2x256xf32>
    %21 = arith.mulf %19, %20 : vector<2x256xf32>
    %22 = arith.addf %16, %21 : vector<2x256xf32>
    %23 = vector.extract_strided_slice %2 {offsets = [0, 3], sizes = [2, 1], strides = [1, 1]} : vector<2x4xf32> to vector<2x1xf32>
    %24 = vector.extract_strided_slice %1 {offsets = [3, 0], sizes = [1, 256], strides = [1, 1]} : vector<4x256xf32> to vector<1x256xf32>
    %25 = vector.broadcast %23 : vector<2x1xf32> to vector<2x256xf32>
    %26 = vector.broadcast %24 : vector<1x256xf32> to vector<2x256xf32>
    %27 = arith.mulf %25, %26 : vector<2x256xf32>
    %28 = arith.addf %22, %27 : vector<2x256xf32>
    %29 = vector.broadcast %3 : vector<2x1xf32> to vector<2x256xf32>
    %30 = arith.addf %28, %29 : vector<2x256xf32>
    %31 = arith.negf %30 : vector<2x256xf32>
    %32 = math.exp %31 : vector<2x256xf32>
    %cst = arith.constant 1.000000e+00 : f32
    %33 = vector.broadcast %cst : f32 to vector<2x256xf32>
    %34 = arith.addf %33, %32 : vector<2x256xf32>
    %35 = arith.divf %33, %34 : vector<2x256xf32>
    %36 = arith.mulf %30, %35 : vector<2x256xf32>
    %37 = vector.extract_strided_slice %4 {offsets = [0, 0], sizes = [4, 1], strides = [1, 1]} : vector<4x2xf32> to vector<4x1xf32>
    %38 = vector.extract_strided_slice %36 {offsets = [0, 0], sizes = [1, 256], strides = [1, 1]} : vector<2x256xf32> to vector<1x256xf32>
    %39 = vector.broadcast %37 : vector<4x1xf32> to vector<4x256xf32>
    %40 = vector.broadcast %38 : vector<1x256xf32> to vector<4x256xf32>
    %41 = arith.mulf %39, %40 : vector<4x256xf32>
    %42 = vector.extract_strided_slice %4 {offsets = [0, 1], sizes = [4, 1], strides = [1, 1]} : vector<4x2xf32> to vector<4x1xf32>
    %43 = vector.extract_strided_slice %36 {offsets = [1, 0], sizes = [1, 256], strides = [1, 1]} : vector<2x256xf32> to vector<1x256xf32>
    %44 = vector.broadcast %42 : vector<4x1xf32> to vector<4x256xf32>
    %45 = vector.broadcast %43 : vector<1x256xf32> to vector<4x256xf32>
    %46 = arith.mulf %44, %45 : vector<4x256xf32>
    %47 = arith.addf %41, %46 : vector<4x256xf32>
    %48 = vector.broadcast %5 : vector<4x1xf32> to vector<4x256xf32>
    %49 = arith.addf %47, %48 : vector<4x256xf32>
    %50 = arith.negf %49 : vector<4x256xf32>
    %51 = math.exp %50 : vector<4x256xf32>
    %cst_10 = arith.constant 1.000000e+00 : f32
    %52 = vector.broadcast %cst_10 : f32 to vector<4x256xf32>
    %53 = arith.addf %52, %51 : vector<4x256xf32>
    %54 = arith.divf %52, %53 : vector<4x256xf32>
    %55 = arith.mulf %54, %1 : vector<4x256xf32>
    %c0_11 = arith.constant 0 : index
    %c0_12 = arith.constant 0 : index
    %c0_13 = arith.constant 0 : index
    %56 = vector.load %arg7[%c0_11, %c0_12, %c0_13] : memref<1x4x256xf32, #tpu.memory_space<vmem>>, vector<1x4x256xf32>
    %57 = vector.shape_cast %56 : vector<1x4x256xf32> to vector<4x256xf32>
    %58 = vector.shape_cast %55 : vector<4x256xf32> to vector<1x4x256xf32>
    tpu.vector_store %arg7[%c0_11, %c0_12, %c0_13], %58 {strides = array<i32>} : memref<1x4x256xf32, #tpu.memory_space<vmem>>, vector<1x4x256xf32>,
    return
  }
  func.func @transform_0(%arg0: i32, %arg1: i32) -> (i32, i32, i32) {
    %c0_i32 = arith.constant 0 : i32
    %c0_i32_0 = arith.constant 0 : i32
    return %arg0, %c0_i32, %arg1 : i32, i32, i32
  }
  func.func @transform_1(%arg0: i32, %arg1: i32) -> (i32, i32) {
    %c0_i32 = arith.constant 0 : i32
    %c0_i32_0 = arith.constant 0 : i32
    %c0_i32_1 = arith.constant 0 : i32
    return %c0_i32, %c0_i32_0 : i32, i32
  }
  func.func @transform_2(%arg0: i32, %arg1: i32) -> (i32, i32) {
    %c0_i32 = arith.constant 0 : i32
    %c0_i32_0 = arith.constant 0 : i32
    %c0_i32_1 = arith.constant 0 : i32
    return %c0_i32, %c0_i32_0 : i32, i32
  }
  func.func @transform_3(%arg0: i32, %arg1: i32) -> (i32, i32) {
    %c0_i32 = arith.constant 0 : i32
    %c0_i32_0 = arith.constant 0 : i32
    %c0_i32_1 = arith.constant 0 : i32
    return %c0_i32, %c0_i32_0 : i32, i32
  }
  func.func @transform_4(%arg0: i32, %arg1: i32) -> (i32, i32) {
    %c0_i32 = arith.constant 0 : i32
    %c0_i32_0 = arith.constant 0 : i32
    %c0_i32_1 = arith.constant 0 : i32
    return %c0_i32, %c0_i32_0 : i32, i32
  }
  func.func @transform_5(%arg0: i32, %arg1: i32) -> (i32, i32, i32) {
    %c0_i32 = arith.constant 0 : i32
    %c0_i32_0 = arith.constant 0 : i32
    return %arg0, %c0_i32, %arg1 : i32, i32, i32
  }
}

</mosaic_0001>

<llo_original>
// kernel: tpu_custom_call.1
$region0: #{tpu_custom_call.1}
  #allocation0 [shape = 'u32[]', space=smem, size = 0x4, offset = 0x4, fixed_abs, tag = 'smem constant byte address 0x4 - core index']
  #allocation1 [shape = 'u32[144,128]{1,0:T(1,128)}', space=vmem, size = 0x12000, scoped, tag = 'internal scratch']
  %s0 = inlined_call_operand.hbm [shape: f32[2,4,256], index: 0, kind: input, shape index: {}]
  %s1 = inlined_call_operand.vmem [shape: f32[2,4], index: 1, kind: input, shape index: {}]
  %s2 = inlined_call_operand.vmem [shape: f32[2,1], index: 2, kind: input, shape index: {}]
  %s3 = inlined_call_operand.vmem [shape: f32[4,2], index: 3, kind: input, shape index: {}]
  %s4 = inlined_call_operand.vmem [shape: f32[4,1], index: 4, kind: input, shape index: {}]
  %s5 = inlined_call_operand.hbm [shape: f32[2,4,256], index: 5, kind: output, shape index: {}]
  %s6 = sld [smem:[#allocation0]]
  $region57: #{tpu_custom_call.1} parent=0
    _
  %s8 = ssub.s32 1, %s6
  %s9 = scalar_select 0, %s8, %s6
  $region1: #{tpu_custom_call.1} parent=0
    #allocation2 [shape = 'u8[8192]{0}', space=vmem, size = 0x2000, scoped, tag = 'input window, operand 0']
    #allocation3 [shape = 's32[2]{0}', space=sflag, size = 0x8, scoped, tag = 'scoped memory for tpu_custom_call.1']
    #allocation4 [shape = 's32[2]{0}', space=sflag, size = 0x8, scoped, tag = 'scoped memory for tpu_custom_call.1']
    #allocation5 [shape = 'u8[8192]{0}', space=vmem, size = 0x2000, scoped, tag = 'output window, operand 0']
    %10 = vsyncpa [#allocation3], 0
    %s11 = scalar_lea.sflag [#allocation3], 1
    %12 = vsyncpa %s11, 0
    %13 = vsyncpa [#allocation4], 0
    %s14 = scalar_lea.sflag [#allocation4], 1
    %15 = vsyncpa %s14, 0
    loop: start=0, step=1, limit=4
    $region2: #{tpu_custom_call.1} parent=1 // loop_pre_header
      _
    $region3: #{tpu_custom_call.1} parent=1 // loop_header
      %s17 = sphi 0, %s21
      %p18 = scmp.ge.s32.totalorder %s17, 4
      %s24 = sphi 0, %s36
      %s25 = sphi 0, %s32
      %s26 = sphi 0, %s24
      %s27 = sphi 0, %s25
      %s28 = sphi 0, %s26
      %s29 = sphi 0, %s27
      %s41 = sphi 0, %s43
      %s44 = sphi 0, %s41
      %s45 = sphi 0, %s44
      %s61 = sphi 0, %s45
      %s65 = sphi 0, %s65
      %s67 = sphi 0, %s65
      %s68 = sphi 0, %s67
      %s82 = sphi 0, %s68
      %s86 = sphi 0, %s86
      %s88 = sphi 0, %s86
      %s89 = sphi 0, %s88
      %s103 = sphi 0, %s89
      %s107 = sphi 0, %s107
      %s109 = sphi 0, %s107
      %s110 = sphi 0, %s109
      %s124 = sphi 0, %s110
      %s128 = sphi 0, %s128
      %s130 = sphi 0, %s128
      %s131 = sphi 0, %s130
      %s145 = sphi 0, %s131
      %s153 = sphi 0, %s155
      %s156 = sphi 0, %s153
      %s157 = sphi 0, %s156
      %s173 = sphi 0, %s157
    $region4: #{tpu_custom_call.1} parent=1 // loop_header_branch
      %20 = sbr.rel (%p18) target = $region8
    $region5: #{tpu_custom_call.1} parent=1 // loop_body
      %s22 = ssub.s32 %s17, 1
      %s23 = ssub.s32 %s17, 2
      %s30 = sadd.s32 1, %s25
      %p31 = scmp.ge.s32.totalorder %s30, 1
      %s32 = scalar_select %p31, 0, %s30
      %s33 = sadd.s32 1, %s24
      %s34 = scalar_select %p31, %s33, %s24
      %p35 = scmp.ge.s32.totalorder %s34, 2
      %s36 = scalar_select %p35, 0, %s34
      %s37 = ssub.s32 %s24, %s36
      %s38 = ssub.s32 %s25, %s32
      %s39 = sor.u32 %s37, %s38
      %p40 = scmp.eq.s32.totalorder %s39, 0
      %s42 = sadd.s32 %s41, 1
      %s43 = scalar_select %p40, %s41, %s42
      %p46 = pneg %p40
      %p47 = scmp.eq.s32.totalorder %s17, 1
      %p48 = por %p46, %p47
      %p49 = scmp.ne.s32.totalorder %s41, %s44
      %p50 = scmp.eq.s32.totalorder %s17, 0
      %p51 = por %p49, %p50
      %p52 = scmp.ne.s32.totalorder %s41, %s44
      %p53 = scmp.eq.s32.totalorder %s22, 1
      %p54 = por %p52, %p53
      %p55 = scmp.ne.s32.totalorder %s44, %s45
      %p56 = scmp.eq.s32.totalorder %s22, 0
      %p57 = por %p55, %p56
      %p58 = scmp.ne.s32.totalorder %s44, %s45
      %p59 = scmp.eq.s32.totalorder %s23, 1
      %p60 = por %p58, %p59
      %p62 = scmp.ne.s32.totalorder %s45, %s61
      %p63 = scmp.eq.s32.totalorder %s23, 0
      %p64 = por %p62, %p63
      %s66 = sadd.s32 %s65, 1
      %p69 = scmp.eq.s32.totalorder %s17, 1
      %p70 = scmp.ne.s32.totalorder %s65, %s67
      %p71 = scmp.eq.s32.totalorder %s17, 0
      %p72 = por %p70, %p71
      %p73 = scmp.ne.s32.totalorder %s65, %s67
      %p74 = scmp.eq.s32.totalorder %s22, 1
      %p75 = por %p73, %p74
      %p76 = scmp.ne.s32.totalorder %s67, %s68
      %p77 = scmp.eq.s32.totalorder %s22, 0
      %p78 = por %p76, %p77
      %p79 = scmp.ne.s32.totalorder %s67, %s68
      %p80 = scmp.eq.s32.totalorder %s23, 1
      %p81 = por %p79, %p80
      %p83 = scmp.ne.s32.totalorder %s68, %s82
      %p84 = scmp.eq.s32.totalorder %s23, 0
      %p85 = por %p83, %p84
      %s87 = sadd.s32 %s86, 1
      %p90 = scmp.eq.s32.totalorder %s17, 1
      %p91 = scmp.ne.s32.totalorder %s86, %s88
      %p92 = scmp.eq.s32.totalorder %s17, 0
      %p93 = por %p91, %p92
      %p94 = scmp.ne.s32.totalorder %s86, %s88
      %p95 = scmp.eq.s32.totalorder %s22, 1
      %p96 = por %p94, %p95
      %p97 = scmp.ne.s32.totalorder %s88, %s89
      %p98 = scmp.eq.s32.totalorder %s22, 0
      %p99 = por %p97, %p98
      %p100 = scmp.ne.s32.totalorder %s88, %s89
      %p101 = scmp.eq.s32.totalorder %s23, 1
      %p102 = por %p100, %p101
      %p104 = scmp.ne.s32.totalorder %s89, %s103
      %p105 = scmp.eq.s32.totalorder %s23, 0
      %p106 = por %p104, %p105
      %s108 = sadd.s32 %s107, 1
      %p111 = scmp.eq.s32.totalorder %s17, 1
      %p112 = scmp.ne.s32.totalorder %s107, %s109
      %p113 = scmp.eq.s32.totalorder %s17, 0
      %p114 = por %p112, %p113
      %p115 = scmp.ne.s32.totalorder %s107, %s109
      %p116 = scmp.eq.s32.totalorder %s22, 1
      %p117 = por %p115, %p116
      %p118 = scmp.ne.s32.totalorder %s109, %s110
      %p119 = scmp.eq.s32.totalorder %s22, 0
      %p120 = por %p118, %p119
      %p121 = scmp.ne.s32.totalorder %s109, %s110
      %p122 = scmp.eq.s32.totalorder %s23, 1
      %p123 = por %p121, %p122
      %p125 = scmp.ne.s32.totalorder %s110, %s124
      %p126 = scmp.eq.s32.totalorder %s23, 0
      %p127 = por %p125, %p126
      %s129 = sadd.s32 %s128, 1
      %p132 = scmp.eq.s32.totalorder %s17, 1
      %p133 = scmp.ne.s32.totalorder %s128, %s130
      %p134 = scmp.eq.s32.totalorder %s17, 0
      %p135 = por %p133, %p134
      %p136 = scmp.ne.s32.totalorder %s128, %s130
      %p137 = scmp.eq.s32.totalorder %s22, 1
      %p138 = por %p136, %p137
      %p139 = scmp.ne.s32.totalorder %s130, %s131
      %p140 = scmp.eq.s32.totalorder %s22, 0
      %p141 = por %p139, %p140
      %p142 = scmp.ne.s32.totalorder %s130, %s131
      %p143 = scmp.eq.s32.totalorder %s23, 1
      %p144 = por %p142, %p143
      %p146 = scmp.ne.s32.totalorder %s131, %s145
      %p147 = scmp.eq.s32.totalorder %s23, 0
      %p148 = por %p146, %p147
      %s149 = ssub.s32 %s24, %s36
      %s150 = ssub.s32 %s25, %s32
      %s151 = sor.u32 %s149, %s150
      %p152 = scmp.eq.s32.totalorder %s151, 0
      %s154 = sadd.s32 %s153, 1
      %s155 = scalar_select %p152, %s153, %s154
      %p158 = pneg %p152
      %p159 = scmp.eq.s32.totalorder %s17, 1
      %p160 = por %p158, %p159
      %p161 = scmp.ne.s32.totalorder %s153, %s156
      %p162 = scmp.eq.s32.totalorder %s17, 0
      %p163 = por %p161, %p162
      %p164 = scmp.ne.s32.totalorder %s153, %s156
      %p165 = scmp.eq.s32.totalorder %s22, 1
      %p166 = por %p164, %p165
      %p167 = scmp.ne.s32.totalorder %s156, %s157
      %p168 = scmp.eq.s32.totalorder %s22, 0
      %p169 = por %p167, %p168
      %p170 = scmp.ne.s32.totalorder %s156, %s157
      %p171 = scmp.eq.s32.totalorder %s23, 1
      %p172 = por %p170, %p171
      %p174 = scmp.ne.s32.totalorder %s157, %s173
      %p175 = scmp.eq.s32.totalorder %s23, 0
      %p176 = por %p174, %p175
      %p177 = scmp.le.s32.totalorder 1, %s17
      %p178 = scmp.lt.s32.totalorder %s17, 3
      %p179 = pnand %p177, %p178
      %p180 = pneg %p179
      // Predicated region
      $region9: #{tpu_custom_call.1} parent=5 // pred_check
        _
      $region10: #{tpu_custom_call.1} parent=5 // pred_check_branch
        %182 = sbr.rel (%p179) target = $region12
      $region11: #{tpu_custom_call.1} parent=5 // pred_region
        %s183 = ssub.s32 %s17, 1
        // Predicated region
        $region13: #{tpu_custom_call.1} parent=11 // pred_check
          %p184 = pneg %p78
        $region14: #{tpu_custom_call.1} parent=11 // pred_check_branch
          %186 = sbr.rel (%p184) target = $region16
        $region15: #{tpu_custom_call.1} parent=11 // pred_region
          _
        $region16: #{tpu_custom_call.1} parent=11 // pred_fallthru
          _
        // Predicated region
        $region17: #{tpu_custom_call.1} parent=11 // pred_check
          %p187 = pneg %p99
        $region18: #{tpu_custom_call.1} parent=11 // pred_check_branch
          %189 = sbr.rel (%p187) target = $region20
        $region19: #{tpu_custom_call.1} parent=11 // pred_region
          _
        $region20: #{tpu_custom_call.1} parent=11 // pred_fallthru
          _
        // Predicated region
        $region21: #{tpu_custom_call.1} parent=11 // pred_check
          %p190 = pneg %p120
        $region22: #{tpu_custom_call.1} parent=11 // pred_check_branch
          %192 = sbr.rel (%p190) target = $region24
        $region23: #{tpu_custom_call.1} parent=11 // pred_region
          _
        $region24: #{tpu_custom_call.1} parent=11 // pred_fallthru
          _
        // Predicated region
        $region25: #{tpu_custom_call.1} parent=11 // pred_check
          %p193 = pneg %p141
        $region26: #{tpu_custom_call.1} parent=11 // pred_check_branch
          %195 = sbr.rel (%p193) target = $region28
        $region27: #{tpu_custom_call.1} parent=11 // pred_region
          _
        $region28: #{tpu_custom_call.1} parent=11 // pred_fallthru
          _
      $region12: #{tpu_custom_call.1} parent=5 // pred_fallthru
        _
      %p196 = scmp.lt.s32.totalorder %s17, 2
      // Predicated region
      $region29: #{tpu_custom_call.1} parent=5 // pred_check
        %p197 = pneg %p196
      $region30: #{tpu_custom_call.1} parent=5 // pred_check_branch
        %199 = sbr.rel (%p197) target = $region32
      $region31: #{tpu_custom_call.1} parent=5 // pred_region
        // Predicated region
        $region33: #{tpu_custom_call.1} parent=31 // pred_check
          %p200 = pneg %p51
        $region34: #{tpu_custom_call.1} parent=31 // pred_check_branch
          %202 = sbr.rel (%p200) target = $region36
        $region35: #{tpu_custom_call.1} parent=31 // pred_region
          %s203 = sand.u32 %s41, 1
          %s204 = scalar_lea.sflag [#allocation3], %s203
          %s205 = sand.u32 %s41, 1
          %s206 = smul.addr %s205, 8
          %s207 = scalar_lea.vmem [#allocation2], %s206
          %s208 = smul.u32 2, %s25
          %s210 = ssub.s32 128, 128
          %211 = vsyncadd %s204, %s210
          %s212 = smul.addr %s24, 2
          %s213 = sadd.s32 %s208, %s212
          %s214 = smul.addr %s213, 64
          %s215 = scalar_lea.hbm %s0, %s214
          %s217 = sshll.u32 %s207, 4
          %s218 = int_to_ptr.vmem [resolvable:$true] %s217
          %220 = dma.hbm_to_vmem [thread:$0]  %s215, 128, %s218, %s204
        $region36: #{tpu_custom_call.1} parent=31 // pred_fallthru
          _
      $region32: #{tpu_custom_call.1} parent=5 // pred_fallthru
        _
      %p221 = scmp.le.s32.totalorder 1, %s17
      %p222 = scmp.lt.s32.totalorder %s17, 3
      %p223 = pnand %p221, %p222
      %p224 = pneg %p223
      // Predicated region
      $region37: #{tpu_custom_call.1} parent=5 // pred_check
        _
      $region38: #{tpu_custom_call.1} parent=5 // pred_check_branch
        %226 = sbr.rel (%p223) target = $region40
      $region39: #{tpu_custom_call.1} parent=5 // pred_region
        %s227 = ssub.s32 %s17, 1
        %s228 = sand.u32 %s44, 1
        %s229 = scalar_lea.sflag [#allocation3], %s228
        %s230 = sand.u32 %s44, 1
        %s231 = smul.addr %s230, 8
        %s232 = scalar_lea.vmem [#allocation2], %s231
        // Predicated region
        $region41: #{tpu_custom_call.1} parent=39 // pred_check
          %p233 = pneg %p57
        $region42: #{tpu_custom_call.1} parent=39 // pred_check_branch
          %235 = sbr.rel (%p233) target = $region44
        $region43: #{tpu_custom_call.1} parent=39 // pred_region
          %236 = dma.done %s229, 128
        $region44: #{tpu_custom_call.1} parent=39 // pred_fallthru
          _
        %s237 = sand.u32 %s44, 1
        %s238 = scalar_lea.sflag [#allocation3], %s237
        %s239 = sand.u32 %s44, 1
        %s240 = smul.addr %s239, 8
        %s241 = scalar_lea.vmem [#allocation2], %s240
        %p242 = pneg %p57
        %p243 = pneg %p54
        %p244 = pneg %p78
        %p245 = pneg %p75
        %p246 = pneg %p99
        %p247 = pneg %p96
        %p248 = pneg %p120
        %p249 = pneg %p117
        %p250 = pneg %p141
        %p251 = pneg %p138
        %p252 = pneg %p169
        %p253 = pneg %p166
        %s254 = sand.u32 %s156, 1
        %s255 = scalar_lea.sflag [#allocation4], %s254
        %s256 = sand.u32 %s156, 1
        %s257 = smul.addr %s256, 8
        %s258 = scalar_lea.vmem [#allocation5], %s257
        %s259 = smul.u32 2, %s27
        %s260 = smul.u32 2, %s27
        %v261 = vld [vmem:[%s232] sm:$0xff]
        %v262 = vld [vmem:[%s1] sm:$0x3]
        %v263 = vld [vmem:[%s2] sm:$0x3]
        %v264 = vld [vmem:[%s3] sm:$0xf]
        %v265 = vld [vmem:[%s4] sm:$0xf]
        %267 = vset.pattern.permute.xlu0 0
        %268 = vperm.xlu0 %267, %v262
        %v269 = vpop.permute.xlu0 %268
        %v272 = vlaneseq
        %v273 = vshrl.u32 %v272, 7
        %v274 = vsub.s32 0, %v273
        %v275 = vrot.slane %v261, %v274
        %v276 = vlaneseq
        %v277 = vshrl.u32 %v276, 7
        %v278 = vsub.s32 4, %v277
        %v279 = vrot.slane %v261, %v278
        %v282 = vlaneseq
        %v283 = vshrl.u32 %v282, 7
        %v284 = vsub.s32 0, %v283
        %v285 = vrot.slane %v275, %v284
        %v286 = vlaneseq
        %v287 = vshrl.u32 %v286, 7
        %v288 = vsub.s32 0, %v287
        %v289 = vrot.slane %v279, %v288
        %v290 = vmul.f32 %v269, %v285
        %v291 = vmul.f32 %v269, %v289
        %292 = vset.pattern.permute.xlu0 1
        %293 = vperm.xlu0 %292, %v262
        %v294 = vpop.permute.xlu0 %293
        %v296 = vlaneseq
        %v297 = vshrl.u32 %v296, 7
        %v298 = vsub.s32 1, %v297
        %v299 = vrot.slane %v261, %v298
        %v300 = vlaneseq
        %v301 = vshrl.u32 %v300, 7
        %v302 = vsub.s32 5, %v301
        %v303 = vrot.slane %v261, %v302
        %v306 = vlaneseq
        %v307 = vshrl.u32 %v306, 7
        %v308 = vsub.s32 1, %v307
        %v309 = vrot.slane %v299, %v308
        %v310 = vlaneseq
        %v311 = vshrl.u32 %v310, 7
        %v312 = vsub.s32 1, %v311
        %v313 = vrot.slane %v303, %v312
        %v314 = vmul.f32 %v294, %v309
        %v315 = vmul.f32 %v294, %v313
        %v316 = vadd.f32 %v290, %v314
        %v317 = vadd.f32 %v291, %v315
        %318 = vset.pattern.permute.xlu0 2
        %319 = vperm.xlu0 %318, %v262
        %v320 = vpop.permute.xlu0 %319
        %v322 = vlaneseq
        %v323 = vshrl.u32 %v322, 7
        %v324 = vsub.s32 2, %v323
        %v325 = vrot.slane %v261, %v324
        %v326 = vlaneseq
        %v327 = vshrl.u32 %v326, 7
        %v328 = vsub.s32 6, %v327
        %v329 = vrot.slane %v261, %v328
        %v332 = vlaneseq
        %v333 = vshrl.u32 %v332, 7
        %v334 = vsub.s32 2, %v333
        %v335 = vrot.slane %v325, %v334
        %v336 = vlaneseq
        %v337 = vshrl.u32 %v336, 7
        %v338 = vsub.s32 2, %v337
        %v339 = vrot.slane %v329, %v338
        %v340 = vmul.f32 %v320, %v335
        %v341 = vmul.f32 %v320, %v339
        %v342 = vadd.f32 %v316, %v340
        %v343 = vadd.f32 %v317, %v341
        %344 = vset.pattern.permute.xlu0 3
        %345 = vperm.xlu0 %344, %v262
        %v346 = vpop.permute.xlu0 %345
        %v348 = vlaneseq
        %v349 = vshrl.u32 %v348, 7
        %v350 = vsub.s32 3, %v349
        %v351 = vrot.slane %v261, %v350
        %v352 = vlaneseq
        %v353 = vshrl.u32 %v352, 7
        %v354 = vsub.s32 7, %v353
        %v355 = vrot.slane %v261, %v354
        %v358 = vlaneseq
        %v359 = vshrl.u32 %v358, 7
        %v360 = vsub.s32 3, %v359
        %v361 = vrot.slane %v351, %v360
        %v362 = vlaneseq
        %v363 = vshrl.u32 %v362, 7
        %v364 = vsub.s32 3, %v363
        %v365 = vrot.slane %v355, %v364
        %v366 = vmul.f32 %v346, %v361
        %v367 = vmul.f32 %v346, %v365
        %v368 = vadd.f32 %v342, %v366
        %v369 = vadd.f32 %v343, %v367
        %371 = vset.pattern.permute.xlu0 0
        %372 = vperm.xlu0 %371, %v263
        %v373 = vpop.permute.xlu0 %372
        %v375 = vadd.f32 %v368, %v373
        %v376 = vadd.f32 %v369, %v373
        %v377 = vxor.u32 %v375, 2147483648
        %v378 = vxor.u32 %v376, 2147483648
        %v379 = vmul.f32 %v377, 1.442695
        %v380 = vpow.pop %v379
        %v381 = vmul.f32 %v378, 1.442695
        %v382 = vpow.pop %v381
        %v383 = vadd.f32 %v380, 1.0
        %v384 = vadd.f32 %v382, 1.0
        %v385 = vrcp.pop %v383
        %v386 = vmul.f32 1.0, %v385
        %v387 = vrcp.pop %v384
        %v388 = vmul.f32 1.0, %v387
        %v389 = vmul.f32 %v375, %v386
        %v390 = vmul.f32 %v376, %v388
        %392 = vset.pattern.permute.xlu0 0
        %393 = vperm.xlu0 %392, %v264
        %v394 = vpop.permute.xlu0 %393
        %v396 = vlaneseq
        %v397 = vshrl.u32 %v396, 7
        %v398 = vsub.s32 0, %v397
        %v399 = vrot.slane %v389, %v398
        %v400 = vlaneseq
        %v401 = vshrl.u32 %v400, 7
        %v402 = vsub.s32 0, %v401
        %v403 = vrot.slane %v390, %v402
        %v404 = vmul.f32 %v394, %v399
        %v405 = vmul.f32 %v394, %v403
        %406 = vset.pattern.permute.xlu0 1
        %407 = vperm.xlu0 %406, %v264
        %v408 = vpop.permute.xlu0 %407
        %v410 = vlaneseq
        %v411 = vshrl.u32 %v410, 7
        %v412 = vsub.s32 1, %v411
        %v413 = vrot.slane %v389, %v412
        %v414 = vlaneseq
        %v415 = vshrl.u32 %v414, 7
        %v416 = vsub.s32 1, %v415
        %v417 = vrot.slane %v390, %v416
        %v418 = vmul.f32 %v408, %v413
        %v419 = vmul.f32 %v408, %v417
        %v420 = vadd.f32 %v404, %v418
        %v421 = vadd.f32 %v405, %v419
        %423 = vset.pattern.permute.xlu0 0
        %424 = vperm.xlu0 %423, %v265
        %v425 = vpop.permute.xlu0 %424
        %v427 = vadd.f32 %v420, %v425
        %v428 = vadd.f32 %v421, %v425
        %v429 = vxor.u32 %v427, 2147483648
        %v430 = vxor.u32 %v428, 2147483648
        %v431 = vmul.f32 %v429, 1.442695
        %v432 = vpow.pop %v431
        %v433 = vmul.f32 %v430, 1.442695
        %v434 = vpow.pop %v433
        %v435 = vadd.f32 %v432, 1.0
        %v436 = vadd.f32 %v434, 1.0
        %v437 = vrcp.pop %v435
        %v438 = vmul.f32 1.0, %v437
        %v439 = vrcp.pop %v436
        %v440 = vmul.f32 1.0, %v439
        %v441 = vcombine.high %v261, %v261
        %v443 = vmul.f32 %v438, %v261
        %v444 = vmul.f32 %v440, %v441
        %v447 = vcombine.low %v443, %v444
        %449 = vst [vmem:[%s258] sm:$0xff] %v447
        %s450 = sand.u32 %s156, 1
        %s451 = scalar_lea.sflag [#allocation4], %s450
        %s452 = sand.u32 %s156, 1
        %s453 = smul.addr %s452, 8
        %s454 = scalar_lea.vmem [#allocation5], %s453
        // Predicated region
        $region45: #{tpu_custom_call.1} parent=39 // pred_check
          %p455 = pneg %p166
        $region46: #{tpu_custom_call.1} parent=39 // pred_check_branch
          %457 = sbr.rel (%p455) target = $region48
        $region47: #{tpu_custom_call.1} parent=39 // pred_region
          %s458 = smul.u32 2, %s27
          %s460 = ssub.s32 128, 128
          %461 = vsyncadd %s451, %s460
          %s462 = smul.addr %s26, 2
          %s463 = sadd.s32 %s458, %s462
          %s464 = smul.addr %s463, 64
          %s465 = scalar_lea.hbm %s5, %s464
          %s467 = sshll.u32 %s454, 4
          %s468 = int_to_ptr.vmem [resolvable:$true] %s467
          %470 = dma.vmem_to_hbm [thread:$0]  %s468, 128, %s465, %s451
        $region48: #{tpu_custom_call.1} parent=39 // pred_fallthru
          _
      $region40: #{tpu_custom_call.1} parent=5 // pred_fallthru
        _
      %p471 = scmp.le.s32.totalorder 2, %s17
      // Predicated region
      $region49: #{tpu_custom_call.1} parent=5 // pred_check
        %p472 = pneg %p471
      $region50: #{tpu_custom_call.1} parent=5 // pred_check_branch
        %474 = sbr.rel (%p472) target = $region52
      $region51: #{tpu_custom_call.1} parent=5 // pred_region
        %s475 = ssub.s32 %s17, 2
        // Predicated region
        $region53: #{tpu_custom_call.1} parent=51 // pred_check
          %p476 = pneg %p172
        $region54: #{tpu_custom_call.1} parent=51 // pred_check_branch
          %478 = sbr.rel (%p476) target = $region56
        $region55: #{tpu_custom_call.1} parent=51 // pred_region
          %s479 = sand.u32 %s157, 1
          %s480 = scalar_lea.sflag [#allocation4], %s479
          %s481 = sand.u32 %s157, 1
          %s482 = smul.addr %s481, 8
          %s483 = scalar_lea.vmem [#allocation5], %s482
          %484 = dma.done %s480, 128
        $region56: #{tpu_custom_call.1} parent=51 // pred_fallthru
          _
      $region52: #{tpu_custom_call.1} parent=5 // pred_fallthru
        _
    $region6: #{tpu_custom_call.1} parent=1 // loop_footer
      %s21 = sadd.s32 1, %s17
    $region7: #{tpu_custom_call.1} parent=1 // loop_footer_branch
      %16 = sbr.rel target = $region3
    $region8: #{tpu_custom_call.1} parent=1 // loop_exit
      _
    %485 = vsyncpa [#allocation3], 1
    %s486 = scalar_lea.sflag [#allocation3], 1
    %487 = vsyncpa %s486, 1
    %488 = vsyncpa [#allocation4], 1
    %s489 = scalar_lea.sflag [#allocation4], 1
    %490 = vsyncpa %s489, 1

</llo_original>
